<compile_context>
chip_gen: v7x
topology: tpu7x:2x2x1
jax: 0.10.0
libtpu: 0.0.40
codegen_flags: <defaults>
</compile_context>

<pallas_src>
import jax
import jax.numpy as jnp
from jax.experimental import pallas as pl
from jax.experimental.pallas import tpu as pltpu

# ---------------- model dimensions (small, synthetic) ----------------
B, H, W = 2, 16, 16      # batch, spatial
C = 8                    # hidden channels of the tiny UNet
TD = 32                  # timestep-embedding dim
PD = 32                  # prompt-embedding dim
NOISE_STEPS = 1000
BETA_START, BETA_END = 1e-4, 0.02

NB = 2 * B               # fused batch: [tgt pass | src pass]
ROWS = NB * H            # 64 rows (b*H + h)
LANES = C * W            # 128 lanes (c*W + w)  -> one full f32 vreg width
NBLK = 2                 # grid blocks (lets v7x's 2 TCs split the batch)
assert (ROWS // NBLK) % H == 0


# ---------------- diffusion schedule (glue, plain JAX) ----------------
def _alpha_hat():
    beta = jnp.linspace(BETA_START, BETA_END, NOISE_STEPS, dtype=jnp.float32)
    return jnp.cumprod(1.0 - beta)

ALPHA_HAT = _alpha_hat()


def timestep_embedding(t, dim):
    half = dim // 2
    freqs = jnp.exp(-jnp.log(10000.0) * jnp.arange(half, dtype=jnp.float32) / half)
    args = t.astype(jnp.float32)[:, None] * freqs[None, :]
    return jnp.concatenate([jnp.sin(args), jnp.cos(args)], axis=-1)  # (NB, dim)


# ---------------- the Pallas kernel ----------------
def lccd_kernel(a_ref, s_ref, x_ref, n_ref, bc_ref, w1_ref, w2_ref, b2_ref, out_ref):
    br, lanes = x_ref.shape  # (32, 128): rows = b*H+h, lanes = c*W+w

    # --- Diffusion.noise_images: blend image with the other-domain image ---
    xt = a_ref[...] * x_ref[...] + s_ref[...] * n_ref[...]          # (br, lanes) f32

    # Boundary masks implementing the conv zero-padding (per-row h, per-lane w).
    h_idx = jax.lax.broadcasted_iota(jnp.int32, (br, 1), 0) % H
    w_idx = jax.lax.broadcasted_iota(jnp.int32, (1, lanes), 1) % W
    keep = {
        (-1, 0): (h_idx != 0).astype(jnp.float32),       # tap uses input[h-1]
        (1, 0): (h_idx != H - 1).astype(jnp.float32),    # tap uses input[h+1]
        (0, -1): (w_idx != 0).astype(jnp.float32),       # tap uses input[w-1]
        (0, 1): (w_idx != W - 1).astype(jnp.float32),    # tap uses input[w+1]
    }

    def conv3x3(v, w_ref_, acc):
        # 3x3 conv with padding=1, channels packed on lanes.
        # tap(dy,dx)[r, l] = v[r+dy, l+dx] (zero outside image / channel segment)
        k = 0
        for dy in (-1, 0, 1):
            base = v if dy == 0 else pltpu.roll(v, shift=(-dy) % br, axis=0)
            if dy != 0:
                base = base * keep[(dy, 0)]
            for dx in (-1, 0, 1):
                tap = base if dx == 0 else pltpu.roll(base, shift=(-dx) % lanes, axis=1)
                if dx != 0:
                    tap = tap * keep[(0, dx)]
                acc = acc + w_ref_[k:k + 1, :] * tap                 # full-width VPU FMA
                k += 1
        return acc

    # --- conv1: 1 -> C channels (+ bias + conditioning already in bc_ref), ReLU ---
    h = jnp.maximum(conv3x3(xt, w1_ref, bc_ref[...]), 0.0)          # (br, lanes)

    # --- conv2: C -> 1 channel ---
    acc = conv3x3(h, w2_ref, jnp.zeros((br, lanes), jnp.float32))

    # Sum over the C channel segments of the lane axis: log2(C) lane folds (XLU).
    seg = C
    while seg > 1:
        seg //= 2
        acc = acc + pltpu.roll(acc, shift=lanes - seg * W, axis=1)

    out_ref[...] = acc[:, :W] + b2_ref[0]                            # (br, W)


# ---------------- wrapper: one fused UNet call over the 2B batch ----------------
def unet_pallas(x, other, t, prompt, params):
    """x, other: (NB, H, W); t: (NB,) int32; prompt: (NB, PD). Returns (NB, H, W) f32."""
    nb = x.shape[0]
    rows = nb * H
    br = rows // NBLK

    ab = ALPHA_HAT[t]
    a_col = jnp.repeat(jnp.sqrt(ab), H)[:, None].astype(jnp.float32)        # (rows, 1)
    s_col = jnp.repeat(jnp.sqrt(1.0 - ab), H)[:, None].astype(jnp.float32)  # (rows, 1)

    # Lane-dense, channel-tiled image slabs: lane = c*W + w holds x[b, h, w].
    x_t = jnp.tile(x.reshape(rows, W).astype(jnp.float32), (1, C))          # (rows, C*W)
    n_t = jnp.tile(other.reshape(rows, W).astype(jnp.float32), (1, C))

    # Conditioning projection (tiny) precomputed here; expanded to the
    # channels-on-lanes layout so the kernel adds it with one full-width add.
    hi = jax.lax.Precision.HIGHEST
    temb = timestep_embedding(t, TD)
    cond = (jnp.dot(temb, params["wt"], precision=hi)
            + jnp.dot(prompt, params["wp"], precision=hi)) + params["b1"][None, :]   # (NB, C)
    bc_full = jnp.repeat(jnp.repeat(cond, H, axis=0), W, axis=1).astype(jnp.float32)  # (rows, C*W)

    # Conv weights as per-tap lane vectors: lane c*W+w = w[ky, kx, c].
    w1v = jnp.repeat(params["w1"].reshape(9, C), W, axis=1).astype(jnp.float32)  # (9, C*W)
    w2v = jnp.repeat(params["w2"].reshape(9, C), W, axis=1).astype(jnp.float32)
    b2 = params["b2"].astype(jnp.float32)                                        # (1,)

    def row_spec(shape):
        return pl.BlockSpec(shape, lambda i: (i, 0))

    out = pl.pallas_call(
        lccd_kernel,
        out_shape=jax.ShapeDtypeStruct((rows, W), jnp.float32),
        grid=(NBLK,),
        in_specs=[
            row_spec((br, 1)), row_spec((br, 1)),
            row_spec((br, LANES)), row_spec((br, LANES)), row_spec((br, LANES)),
            pl.BlockSpec((9, LANES), lambda i: (0, 0)),
            pl.BlockSpec((9, LANES), lambda i: (0, 0)),
            pl.BlockSpec(memory_space=pltpu.MemorySpace.SMEM),
        ],
        out_specs=row_spec((br, W)),
        compiler_params=pltpu.CompilerParams(dimension_semantics=("parallel",)),
    )(a_col, s_col, x_t, n_t, bc_full, w1v, w2v, b2)
    return out.reshape(nb, H, W)


# ---------------- LCCD forward (both passes fused into one kernel call) ----------------
def lccd_forward(src_lr, tgt_lr, prompt_src, prompt_tgt, params, key):
    k1, k2 = jax.random.split(key)
    # t_1 = diffusion.sample_timesteps(B); tgt_t = noise_images(tgt, src, t_1)
    t1 = jax.random.randint(k1, (src_lr.shape[0],), 1, NOISE_STEPS)
    # t_2 = diffusion.sample_timesteps(B); src_t = noise_images(src, tgt, t_2)
    t2 = jax.random.randint(k2, (tgt_lr.shape[0],), 1, NOISE_STEPS)

    # fused 2B batch: [tgt pass | src pass]  (the UNet weights are shared)
    x = jnp.concatenate([tgt_lr, src_lr], axis=0)
    other = jnp.concatenate([src_lr, tgt_lr], axis=0)
    t = jnp.concatenate([t1, t2], axis=0)
    prompt = jnp.concatenate([prompt_tgt, prompt_src], axis=0)

    out = unet_pallas(x, other, t, prompt, params)      # (2B, H, W)
    b = src_lr.shape[0]
    return out[:b][:, None], out[b:][:, None]           # each (B, 1, H, W)


# ---------------- deterministic parameter init ----------------
def init_params(key):
    ks = jax.random.split(key, 6)
    scale = 0.1
    return dict(
        wt=scale * jax.random.normal(ks[0], (TD, C), jnp.float32),
        wp=scale * jax.random.normal(ks[1], (PD, C), jnp.float32),
        w1=scale * jax.random.normal(ks[2], (3, 3, C), jnp.float32),  # (ky, kx, out_c), in_c=1
        b1=scale * jax.random.normal(ks[3], (C,), jnp.float32),
        w2=scale * jax.random.normal(ks[4], (3, 3, C), jnp.float32),  # (ky, kx, in_c), out_c=1
        b2=scale * jax.random.normal(ks[5], (1,), jnp.float32),
    )


# ---------------- pure-JAX reference (for correctness check) ----------------
def unet_ref(x, noise_img, t, prompt, params):
    ab = ALPHA_HAT[t]
    xt = jnp.sqrt(ab)[:, None, None] * x + jnp.sqrt(1.0 - ab)[:, None, None] * noise_img
    temb = timestep_embedding(t, TD)
    hi = jax.lax.Precision.HIGHEST
    cond = (jnp.dot(temb, params["wt"], precision=hi)
            + jnp.dot(prompt, params["wp"], precision=hi))                 # (B, C)
    xp = jnp.pad(xt, ((0, 0), (1, 1), (1, 1)))
    acc = jnp.zeros((x.shape[0], C, H, W), jnp.float32)
    for dy in range(3):
        for dx in range(3):
            acc = acc + (params["w1"][dy, dx][None, :, None, None]
                         * xp[:, dy:dy + H, dx:dx + W][:, None])
    h1 = jnp.maximum(acc + (params["b1"][None] + cond)[:, :, None, None], 0.0)
    hp = jnp.pad(h1, ((0, 0), (0, 0), (1, 1), (1, 1)))
    out = jnp.zeros((x.shape[0], H, W), jnp.float32)
    for dy in range(3):
        for dx in range(3):
            out = out + jnp.sum(params["w2"][dy, dx][None, :, None, None]
                                * hp[:, :, dy:dy + H, dx:dx + W], axis=1)
    return (out + params["b2"][0])[:, None]


if __name__ == "__main__":
    key = jax.random.PRNGKey(0)
    k_param, k_src, k_tgt, k_ps, k_pt, k_t = jax.random.split(key, 6)
    params = init_params(k_param)

    src_lr = jax.random.normal(k_src, (B, H, W), jnp.float32)
    tgt_lr = jax.random.normal(k_tgt, (B, H, W), jnp.float32)
    prompt_src = jax.random.normal(k_ps, (B, PD), jnp.float32)
    prompt_tgt = jax.random.normal(k_pt, (B, PD), jnp.float32)

    fwd = jax.jit(lccd_forward)
    tgt_out, src_out = fwd(src_lr, tgt_lr, prompt_src, prompt_tgt, params, k_t)
    jax.block_until_ready((tgt_out, src_out))

    # correctness check against a pure-JAX reference (same timestep keys)
    k1, k2 = jax.random.split(k_t)
    t1 = jax.random.randint(k1, (B,), 1, NOISE_STEPS)
    t2 = jax.random.randint(k2, (B,), 1, NOISE_STEPS)
    ref_tgt = unet_ref(tgt_lr, src_lr, t1, prompt_tgt, params)
    ref_src = unet_ref(src_lr, tgt_lr, t2, prompt_src, params)
    assert tgt_out.shape == (B, 1, H, W) and src_out.shape == (B, 1, H, W)
    assert jnp.allclose(tgt_out, ref_tgt, atol=1e-3, rtol=1e-3)
    assert jnp.allclose(src_out, ref_src, atol=1e-3, rtol=1e-3)

    print("KERNEL_OK")
</pallas_src>

<mosaic_0001>
module attributes {stable_mosaic.version = 11 : i64} {
  func.func @lccd_kernel(%arg0: i32, %arg1: memref<32x1xf32, #tpu.memory_space<vmem>>, %arg2: memref<32x1xf32, #tpu.memory_space<vmem>>, %arg3: memref<32x128xf32, #tpu.memory_space<vmem>>, %arg4: memref<32x128xf32, #tpu.memory_space<vmem>>, %arg5: memref<32x128xf32, #tpu.memory_space<vmem>>, %arg6: memref<9x128xf32, #tpu.memory_space<vmem>>, %arg7: memref<9x128xf32, #tpu.memory_space<vmem>>, %arg8: memref<1xf32, #tpu.memory_space<smem>>, %arg9: memref<32x16xf32, #tpu.memory_space<vmem>>) attributes {dimension_semantics = [#tpu.dimension_semantics<parallel>], iteration_bounds = array<i64: 2>, scalar_prefetch = 0 : i64, scratch_operands = 0 : i64, tpu.core_type = #tpu.core_type<tc>, window_params = [{transform_indices = @transform_0, window_bounds = array<i64: 32, 1>}, {transform_indices = @transform_1, window_bounds = array<i64: 32, 1>}, {transform_indices = @transform_2, window_bounds = array<i64: 32, 128>}, {transform_indices = @transform_3, window_bounds = array<i64: 32, 128>}, {transform_indices = @transform_4, window_bounds = array<i64: 32, 128>}, {pipeline_mode = #tpu.pipeline_mode<synchronous>, transform_indices = @transform_5, window_bounds = array<i64: 9, 128>}, {pipeline_mode = #tpu.pipeline_mode<synchronous>, transform_indices = @transform_6, window_bounds = array<i64: 9, 128>}, {transform_indices = @transform_7, window_bounds = array<i64: 1>}, {transform_indices = @transform_8, window_bounds = array<i64: 32, 16>}]} {
    %c0 = arith.constant 0 : index
    %c0_0 = arith.constant 0 : index
    %0 = vector.load %arg1[%c0, %c0_0] : memref<32x1xf32, #tpu.memory_space<vmem>>, vector<32x1xf32>
    %c0_1 = arith.constant 0 : index
    %c0_2 = arith.constant 0 : index
    %1 = vector.load %arg3[%c0_1, %c0_2] : memref<32x128xf32, #tpu.memory_space<vmem>>, vector<32x128xf32>
    %2 = vector.broadcast %0 : vector<32x1xf32> to vector<32x128xf32>
    %3 = arith.mulf %2, %1 : vector<32x128xf32>
    %c0_3 = arith.constant 0 : index
    %c0_4 = arith.constant 0 : index
    %4 = vector.load %arg2[%c0_3, %c0_4] : memref<32x1xf32, #tpu.memory_space<vmem>>, vector<32x1xf32>
    %c0_5 = arith.constant 0 : index
    %c0_6 = arith.constant 0 : index
    %5 = vector.load %arg4[%c0_5, %c0_6] : memref<32x128xf32, #tpu.memory_space<vmem>>, vector<32x128xf32>
    %6 = vector.broadcast %4 : vector<32x1xf32> to vector<32x128xf32>
    %7 = arith.mulf %6, %5 : vector<32x128xf32>
    %8 = arith.addf %3, %7 : vector<32x128xf32>
    %9 = tpu.iota {dimensions = array<i32: 0>} : vector<32x1xi32>
    %c16_i32 = arith.constant 16 : i32
    %c0_i32 = arith.constant 0 : i32
    %10 = arith.cmpi eq, %c16_i32, %c0_i32 : i32
    %c1_i32 = arith.constant 1 : i32
    %11 = arith.select %10, %c1_i32, %c16_i32 : i32
    %12 = vector.broadcast %11 : i32 to vector<32x1xi32>
    %13 = arith.remsi %9, %12 : vector<32x1xi32>
    %c0_i32_7 = arith.constant 0 : i32
    %14 = vector.broadcast %c0_i32_7 : i32 to vector<32x1xi32>
    %15 = arith.cmpi ne, %13, %14 : vector<32x1xi32>
    %c0_i32_8 = arith.constant 0 : i32
    %16 = vector.broadcast %c0_i32_8 : i32 to vector<32x1xi32>
    %17 = arith.cmpi slt, %13, %16 : vector<32x1xi32>
    %c0_i32_9 = arith.constant 0 : i32
    %18 = arith.cmpi slt, %11, %c0_i32_9 : i32
    %19 = vector.broadcast %18 : i1 to vector<32x1xi1>
    %20 = vector.broadcast %19 : vector<32x1xi1> to vector<32x1xi1>
    %21 = arith.xori %17, %20 : vector<32x1xi1>
    %22 = arith.andi %21, %15 : vector<32x1xi1>
    %23 = vector.broadcast %11 : i32 to vector<32x1xi32>
    %24 = arith.addi %13, %23 : vector<32x1xi32>
    %25 = arith.select %22, %24, %13 : vector<32x1xi1>, vector<32x1xi32>
    %26 = tpu.iota {dimensions = array<i32: 1>} : vector<1x128xi32>
    %c16_i32_10 = arith.constant 16 : i32
    %c0_i32_11 = arith.constant 0 : i32
    %27 = arith.cmpi eq, %c16_i32_10, %c0_i32_11 : i32
    %c1_i32_12 = arith.constant 1 : i32
    %28 = arith.select %27, %c1_i32_12, %c16_i32_10 : i32
    %29 = vector.broadcast %28 : i32 to vector<1x128xi32>
    %30 = arith.remsi %26, %29 : vector<1x128xi32>
    %c0_i32_13 = arith.constant 0 : i32
    %31 = vector.broadcast %c0_i32_13 : i32 to vector<1x128xi32>
    %32 = arith.cmpi ne, %30, %31 : vector<1x128xi32>
    %c0_i32_14 = arith.constant 0 : i32
    %33 = vector.broadcast %c0_i32_14 : i32 to vector<1x128xi32>
    %34 = arith.cmpi slt, %30, %33 : vector<1x128xi32>
    %c0_i32_15 = arith.constant 0 : i32
    %35 = arith.cmpi slt, %28, %c0_i32_15 : i32
    %36 = vector.broadcast %35 : i1 to vector<1x128xi1>
    %37 = vector.broadcast %36 : vector<1x128xi1> to vector<1x128xi1>
    %38 = arith.xori %34, %37 : vector<1x128xi1>
    %39 = arith.andi %38, %32 : vector<1x128xi1>
    %40 = vector.broadcast %28 : i32 to vector<1x128xi32>
    %41 = arith.addi %30, %40 : vector<1x128xi32>
    %42 = arith.select %39, %41, %30 : vector<1x128xi1>, vector<1x128xi32>
    %c0_i32_16 = arith.constant 0 : i32
    %43 = vector.broadcast %c0_i32_16 : i32 to vector<32x1xi32>
    %44 = arith.cmpi ne, %25, %43 : vector<32x1xi32>
    %45 = arith.extui %44 : vector<32x1xi1> to vector<32x1xi32>
    %46 = arith.sitofp %45 : vector<32x1xi32> to vector<32x1xf32>
    %c15_i32 = arith.constant 15 : i32
    %47 = vector.broadcast %c15_i32 : i32 to vector<32x1xi32>
    %48 = arith.cmpi ne, %25, %47 : vector<32x1xi32>
    %49 = arith.extui %48 : vector<32x1xi1> to vector<32x1xi32>
    %50 = arith.sitofp %49 : vector<32x1xi32> to vector<32x1xf32>
    %c0_i32_17 = arith.constant 0 : i32
    %51 = vector.broadcast %c0_i32_17 : i32 to vector<1x128xi32>
    %52 = arith.cmpi ne, %42, %51 : vector<1x128xi32>
    %53 = arith.extui %52 : vector<1x128xi1> to vector<1x128xi32>
    %54 = arith.sitofp %53 : vector<1x128xi32> to vector<1x128xf32>
    %c15_i32_18 = arith.constant 15 : i32
    %55 = vector.broadcast %c15_i32_18 : i32 to vector<1x128xi32>
    %56 = arith.cmpi ne, %42, %55 : vector<1x128xi32>
    %57 = arith.extui %56 : vector<1x128xi1> to vector<1x128xi32>
    %58 = arith.sitofp %57 : vector<1x128xi32> to vector<1x128xf32>
    %c0_19 = arith.constant 0 : index
    %c0_20 = arith.constant 0 : index
    %59 = vector.load %arg5[%c0_19, %c0_20] : memref<32x128xf32, #tpu.memory_space<vmem>>, vector<32x128xf32>
    %c1_i32_21 = arith.constant 1 : i32
    %60 = tpu.dynamic_rotate %8 by %c1_i32_21 dim 0 : vector<32x128xf32>, i32 -> vector<32x128xf32>
    %61 = vector.broadcast %46 : vector<32x1xf32> to vector<32x128xf32>
    %62 = arith.mulf %60, %61 : vector<32x128xf32>
    %c1_i32_22 = arith.constant 1 : i32
    %63 = tpu.dynamic_rotate %62 by %c1_i32_22 dim 1 : vector<32x128xf32>, i32 -> vector<32x128xf32>
    %64 = vector.broadcast %54 : vector<1x128xf32> to vector<32x128xf32>
    %65 = arith.mulf %63, %64 : vector<32x128xf32>
    %c0_23 = arith.constant 0 : index
    %c0_24 = arith.constant 0 : index
    %66 = vector.load %arg6[%c0_23, %c0_24] : memref<9x128xf32, #tpu.memory_space<vmem>>, vector<1x128xf32>
    %67 = vector.broadcast %66 : vector<1x128xf32> to vector<32x128xf32>
    %68 = arith.mulf %67, %65 : vector<32x128xf32>
    %69 = arith.addf %59, %68 : vector<32x128xf32>
    %c1 = arith.constant 1 : index
    %c0_25 = arith.constant 0 : index
    %70 = vector.load %arg6[%c1, %c0_25] : memref<9x128xf32, #tpu.memory_space<vmem>>, vector<1x128xf32>
    %71 = vector.broadcast %70 : vector<1x128xf32> to vector<32x128xf32>
    %72 = arith.mulf %71, %62 : vector<32x128xf32>
    %73 = arith.addf %69, %72 : vector<32x128xf32>
    %c127_i32 = arith.constant 127 : i32
    %74 = tpu.dynamic_rotate %62 by %c127_i32 dim 1 : vector<32x128xf32>, i32 -> vector<32x128xf32>
    %75 = vector.broadcast %58 : vector<1x128xf32> to vector<32x128xf32>
    %76 = arith.mulf %74, %75 : vector<32x128xf32>
    %c2 = arith.constant 2 : index
    %c0_26 = arith.constant 0 : index
    %77 = vector.load %arg6[%c2, %c0_26] : memref<9x128xf32, #tpu.memory_space<vmem>>, vector<1x128xf32>
    %78 = vector.broadcast %77 : vector<1x128xf32> to vector<32x128xf32>
    %79 = arith.mulf %78, %76 : vector<32x128xf32>
    %80 = arith.addf %73, %79 : vector<32x128xf32>
    %c1_i32_27 = arith.constant 1 : i32
    %81 = tpu.dynamic_rotate %8 by %c1_i32_27 dim 1 : vector<32x128xf32>, i32 -> vector<32x128xf32>
    %82 = vector.broadcast %54 : vector<1x128xf32> to vector<32x128xf32>
    %83 = arith.mulf %81, %82 : vector<32x128xf32>
    %c3 = arith.constant 3 : index
    %c0_28 = arith.constant 0 : index
    %84 = vector.load %arg6[%c3, %c0_28] : memref<9x128xf32, #tpu.memory_space<vmem>>, vector<1x128xf32>
    %85 = vector.broadcast %84 : vector<1x128xf32> to vector<32x128xf32>
    %86 = arith.mulf %85, %83 : vector<32x128xf32>
    %87 = arith.addf %80, %86 : vector<32x128xf32>
    %c4 = arith.constant 4 : index
    %c0_29 = arith.constant 0 : index
    %88 = vector.load %arg6[%c4, %c0_29] : memref<9x128xf32, #tpu.memory_space<vmem>>, vector<1x128xf32>
    %89 = vector.broadcast %88 : vector<1x128xf32> to vector<32x128xf32>
    %90 = arith.mulf %89, %8 : vector<32x128xf32>
    %91 = arith.addf %87, %90 : vector<32x128xf32>
    %c127_i32_30 = arith.constant 127 : i32
    %92 = tpu.dynamic_rotate %8 by %c127_i32_30 dim 1 : vector<32x128xf32>, i32 -> vector<32x128xf32>
    %93 = vector.broadcast %58 : vector<1x128xf32> to vector<32x128xf32>
    %94 = arith.mulf %92, %93 : vector<32x128xf32>
    %c5 = arith.constant 5 : index
    %c0_31 = arith.constant 0 : index
    %95 = vector.load %arg6[%c5, %c0_31] : memref<9x128xf32, #tpu.memory_space<vmem>>, vector<1x128xf32>
    %96 = vector.broadcast %95 : vector<1x128xf32> to vector<32x128xf32>
    %97 = arith.mulf %96, %94 : vector<32x128xf32>
    %98 = arith.addf %91, %97 : vector<32x128xf32>
    %c31_i32 = arith.constant 31 : i32
    %99 = tpu.dynamic_rotate %8 by %c31_i32 dim 0 : vector<32x128xf32>, i32 -> vector<32x128xf32>
    %100 = vector.broadcast %50 : vector<32x1xf32> to vector<32x128xf32>
    %101 = arith.mulf %99, %100 : vector<32x128xf32>
    %c1_i32_32 = arith.constant 1 : i32
    %102 = tpu.dynamic_rotate %101 by %c1_i32_32 dim 1 : vector<32x128xf32>, i32 -> vector<32x128xf32>
    %103 = vector.broadcast %54 : vector<1x128xf32> to vector<32x128xf32>
    %104 = arith.mulf %102, %103 : vector<32x128xf32>
    %c6 = arith.constant 6 : index
    %c0_33 = arith.constant 0 : index
    %105 = vector.load %arg6[%c6, %c0_33] : memref<9x128xf32, #tpu.memory_space<vmem>>, vector<1x128xf32>
    %106 = vector.broadcast %105 : vector<1x128xf32> to vector<32x128xf32>
    %107 = arith.mulf %106, %104 : vector<32x128xf32>
    %108 = arith.addf %98, %107 : vector<32x128xf32>
    %c7 = arith.constant 7 : index
    %c0_34 = arith.constant 0 : index
    %109 = vector.load %arg6[%c7, %c0_34] : memref<9x128xf32, #tpu.memory_space<vmem>>, vector<1x128xf32>
    %110 = vector.broadcast %109 : vector<1x128xf32> to vector<32x128xf32>
    %111 = arith.mulf %110, %101 : vector<32x128xf32>
    %112 = arith.addf %108, %111 : vector<32x128xf32>
    %c127_i32_35 = arith.constant 127 : i32
    %113 = tpu.dynamic_rotate %101 by %c127_i32_35 dim 1 : vector<32x128xf32>, i32 -> vector<32x128xf32>
    %114 = vector.broadcast %58 : vector<1x128xf32> to vector<32x128xf32>
    %115 = arith.mulf %113, %114 : vector<32x128xf32>
    %c8 = arith.constant 8 : index
    %c0_36 = arith.constant 0 : index
    %116 = vector.load %arg6[%c8, %c0_36] : memref<9x128xf32, #tpu.memory_space<vmem>>, vector<1x128xf32>
    %117 = vector.broadcast %116 : vector<1x128xf32> to vector<32x128xf32>
    %118 = arith.mulf %117, %115 : vector<32x128xf32>
    %119 = arith.addf %112, %118 : vector<32x128xf32>
    %cst = arith.constant 0.000000e+00 : f32
    %120 = vector.broadcast %cst : f32 to vector<32x128xf32>
    %121 = arith.maximumf %119, %120 : vector<32x128xf32>
    %cst_37 = arith.constant 0.000000e+00 : f32
    %122 = vector.broadcast %cst_37 : f32 to vector<32x128xf32>
    %c1_i32_38 = arith.constant 1 : i32
    %123 = tpu.dynamic_rotate %121 by %c1_i32_38 dim 0 : vector<32x128xf32>, i32 -> vector<32x128xf32>
    %124 = vector.broadcast %46 : vector<32x1xf32> to vector<32x128xf32>
    %125 = arith.mulf %123, %124 : vector<32x128xf32>
    %c1_i32_39 = arith.constant 1 : i32
    %126 = tpu.dynamic_rotate %125 by %c1_i32_39 dim 1 : vector<32x128xf32>, i32 -> vector<32x128xf32>
    %127 = vector.broadcast %54 : vector<1x128xf32> to vector<32x128xf32>
    %128 = arith.mulf %126, %127 : vector<32x128xf32>
    %c0_40 = arith.constant 0 : index
    %c0_41 = arith.constant 0 : index
    %129 = vector.load %arg7[%c0_40, %c0_41] : memref<9x128xf32, #tpu.memory_space<vmem>>, vector<1x128xf32>
    %130 = vector.broadcast %129 : vector<1x128xf32> to vector<32x128xf32>
    %131 = arith.mulf %130, %128 : vector<32x128xf32>
    %132 = arith.addf %122, %131 : vector<32x128xf32>
    %c1_42 = arith.constant 1 : index
    %c0_43 = arith.constant 0 : index
    %133 = vector.load %arg7[%c1_42, %c0_43] : memref<9x128xf32, #tpu.memory_space<vmem>>, vector<1x128xf32>
    %134 = vector.broadcast %133 : vector<1x128xf32> to vector<32x128xf32>
    %135 = arith.mulf %134, %125 : vector<32x128xf32>
    %136 = arith.addf %132, %135 : vector<32x128xf32>
    %c127_i32_44 = arith.constant 127 : i32
    %137 = tpu.dynamic_rotate %125 by %c127_i32_44 dim 1 : vector<32x128xf32>, i32 -> vector<32x128xf32>
    %138 = vector.broadcast %58 : vector<1x128xf32> to vector<32x128xf32>
    %139 = arith.mulf %137, %138 : vector<32x128xf32>
    %c2_45 = arith.constant 2 : index
    %c0_46 = arith.constant 0 : index
    %140 = vector.load %arg7[%c2_45, %c0_46] : memref<9x128xf32, #tpu.memory_space<vmem>>, vector<1x128xf32>
    %141 = vector.broadcast %140 : vector<1x128xf32> to vector<32x128xf32>
    %142 = arith.mulf %141, %139 : vector<32x128xf32>
    %143 = arith.addf %136, %142 : vector<32x128xf32>
    %c1_i32_47 = arith.constant 1 : i32
    %144 = tpu.dynamic_rotate %121 by %c1_i32_47 dim 1 : vector<32x128xf32>, i32 -> vector<32x128xf32>
    %145 = vector.broadcast %54 : vector<1x128xf32> to vector<32x128xf32>
    %146 = arith.mulf %144, %145 : vector<32x128xf32>
    %c3_48 = arith.constant 3 : index
    %c0_49 = arith.constant 0 : index
    %147 = vector.load %arg7[%c3_48, %c0_49] : memref<9x128xf32, #tpu.memory_space<vmem>>, vector<1x128xf32>
    %148 = vector.broadcast %147 : vector<1x128xf32> to vector<32x128xf32>
    %149 = arith.mulf %148, %146 : vector<32x128xf32>
    %150 = arith.addf %143, %149 : vector<32x128xf32>
    %c4_50 = arith.constant 4 : index
    %c0_51 = arith.constant 0 : index
    %151 = vector.load %arg7[%c4_50, %c0_51] : memref<9x128xf32, #tpu.memory_space<vmem>>, vector<1x128xf32>
    %152 = vector.broadcast %151 : vector<1x128xf32> to vector<32x128xf32>
    %153 = arith.mulf %152, %121 : vector<32x128xf32>
    %154 = arith.addf %150, %153 : vector<32x128xf32>
    %c127_i32_52 = arith.constant 127 : i32
    %155 = tpu.dynamic_rotate %121 by %c127_i32_52 dim 1 : vector<32x128xf32>, i32 -> vector<32x128xf32>
    %156 = vector.broadcast %58 : vector<1x128xf32> to vector<32x128xf32>
    %157 = arith.mulf %155, %156 : vector<32x128xf32>
    %c5_53 = arith.constant 5 : index
    %c0_54 = arith.constant 0 : index
    %158 = vector.load %arg7[%c5_53, %c0_54] : memref<9x128xf32, #tpu.memory_space<vmem>>, vector<1x128xf32>
    %159 = vector.broadcast %158 : vector<1x128xf32> to vector<32x128xf32>
    %160 = arith.mulf %159, %157 : vector<32x128xf32>
    %161 = arith.addf %154, %160 : vector<32x128xf32>
    %c31_i32_55 = arith.constant 31 : i32
    %162 = tpu.dynamic_rotate %121 by %c31_i32_55 dim 0 : vector<32x128xf32>, i32 -> vector<32x128xf32>
    %163 = vector.broadcast %50 : vector<32x1xf32> to vector<32x128xf32>
    %164 = arith.mulf %162, %163 : vector<32x128xf32>
    %c1_i32_56 = arith.constant 1 : i32
    %165 = tpu.dynamic_rotate %164 by %c1_i32_56 dim 1 : vector<32x128xf32>, i32 -> vector<32x128xf32>
    %166 = vector.broadcast %54 : vector<1x128xf32> to vector<32x128xf32>
    %167 = arith.mulf %165, %166 : vector<32x128xf32>
    %c6_57 = arith.constant 6 : index
    %c0_58 = arith.constant 0 : index
    %168 = vector.load %arg7[%c6_57, %c0_58] : memref<9x128xf32, #tpu.memory_space<vmem>>, vector<1x128xf32>
    %169 = vector.broadcast %168 : vector<1x128xf32> to vector<32x128xf32>
    %170 = arith.mulf %169, %167 : vector<32x128xf32>
    %171 = arith.addf %161, %170 : vector<32x128xf32>
    %c7_59 = arith.constant 7 : index
    %c0_60 = arith.constant 0 : index
    %172 = vector.load %arg7[%c7_59, %c0_60] : memref<9x128xf32, #tpu.memory_space<vmem>>, vector<1x128xf32>
    %173 = vector.broadcast %172 : vector<1x128xf32> to vector<32x128xf32>
    %174 = arith.mulf %173, %164 : vector<32x128xf32>
    %175 = arith.addf %171, %174 : vector<32x128xf32>
    %c127_i32_61 = arith.constant 127 : i32
    %176 = tpu.dynamic_rotate %164 by %c127_i32_61 dim 1 : vector<32x128xf32>, i32 -> vector<32x128xf32>
    %177 = vector.broadcast %58 : vector<1x128xf32> to vector<32x128xf32>
    %178 = arith.mulf %176, %177 : vector<32x128xf32>
    %c8_62 = arith.constant 8 : index
    %c0_63 = arith.constant 0 : index
    %179 = vector.load %arg7[%c8_62, %c0_63] : memref<9x128xf32, #tpu.memory_space<vmem>>, vector<1x128xf32>
    %180 = vector.broadcast %179 : vector<1x128xf32> to vector<32x128xf32>
    %181 = arith.mulf %180, %178 : vector<32x128xf32>
    %182 = arith.addf %175, %181 : vector<32x128xf32>
    %c64_i32 = arith.constant 64 : i32
    %183 = tpu.dynamic_rotate %182 by %c64_i32 dim 1 : vector<32x128xf32>, i32 -> vector<32x128xf32>
    %184 = arith.addf %182, %183 : vector<32x128xf32>
    %c96_i32 = arith.constant 96 : i32
    %185 = tpu.dynamic_rotate %184 by %c96_i32 dim 1 : vector<32x128xf32>, i32 -> vector<32x128xf32>
    %186 = arith.addf %184, %185 : vector<32x128xf32>
    %c112_i32 = arith.constant 112 : i32
    %187 = tpu.dynamic_rotate %186 by %c112_i32 dim 1 : vector<32x128xf32>, i32 -> vector<32x128xf32>
    %188 = arith.addf %186, %187 : vector<32x128xf32>
    %189 = vector.extract_strided_slice %188 {offsets = [0, 0], sizes = [32, 16], strides = [1, 1]} : vector<32x128xf32> to vector<32x16xf32>
    %c0_64 = arith.constant 0 : index
    %190 = memref.load %arg8[%c0_64] : memref<1xf32, #tpu.memory_space<smem>>
    %191 = vector.broadcast %190 : f32 to vector<32x16xf32>
    %192 = arith.addf %189, %191 : vector<32x16xf32>
    %c0_65 = arith.constant 0 : index
    %c0_66 = arith.constant 0 : index
    %193 = vector.load %arg9[%c0_65, %c0_66] : memref<32x16xf32, #tpu.memory_space<vmem>>, vector<32x16xf32>
    tpu.vector_store %arg9[%c0_65, %c0_66], %192 {strides = array<i32>} : memref<32x16xf32, #tpu.memory_space<vmem>>, vector<32x16xf32>,
    return
  }
  func.func @transform_0(%arg0: i32) -> (i32, i32) {
    %c0_i32 = arith.constant 0 : i32
    %c0_i32_0 = arith.constant 0 : i32
    return %arg0, %c0_i32 : i32, i32
  }
  func.func @transform_1(%arg0: i32) -> (i32, i32) {
    %c0_i32 = arith.constant 0 : i32
    %c0_i32_0 = arith.constant 0 : i32
    return %arg0, %c0_i32 : i32, i32
  }
  func.func @transform_2(%arg0: i32) -> (i32, i32) {
    %c0_i32 = arith.constant 0 : i32
    %c0_i32_0 = arith.constant 0 : i32
    return %arg0, %c0_i32 : i32, i32
  }
  func.func @transform_3(%arg0: i32) -> (i32, i32) {
    %c0_i32 = arith.constant 0 : i32
    %c0_i32_0 = arith.constant 0 : i32
    return %arg0, %c0_i32 : i32, i32
  }
  func.func @transform_4(%arg0: i32) -> (i32, i32) {
    %c0_i32 = arith.constant 0 : i32
    %c0_i32_0 = arith.constant 0 : i32
    return %arg0, %c0_i32 : i32, i32
  }
  func.func @transform_5(%arg0: i32) -> (i32, i32) {
    %c0_i32 = arith.constant 0 : i32
    %c0_i32_0 = arith.constant 0 : i32
    %c0_i32_1 = arith.constant 0 : i32
    return %c0_i32, %c0_i32_0 : i32, i32
  }
  func.func @transform_6(%arg0: i32) -> (i32, i32) {
    %c0_i32 = arith.constant 0 : i32
    %c0_i32_0 = arith.constant 0 : i32
    %c0_i32_1 = arith.constant 0 : i32
    return %c0_i32, %c0_i32_0 : i32, i32
  }
  func.func @transform_7(%arg0: i32) -> i32 {
    %c0_i32 = arith.constant 0 : i32
    %c0_i32_0 = arith.constant 0 : i32
    return %c0_i32 : i32
  }
  func.func @transform_8(%arg0: i32) -> (i32, i32) {
    %c0_i32 = arith.constant 0 : i32
    %c0_i32_0 = arith.constant 0 : i32
    return %arg0, %c0_i32 : i32, i32
  }
}

</mosaic_0001>

<llo_original>
// kernel: lccd_forward.39
$region0: #{lccd_forward.39}
  #allocation0 [shape = 'u32[]', space=smem, size = 0x4, offset = 0x4, fixed_abs, tag = 'smem constant byte address 0x4 - core index']
  #allocation1 [shape = 'u32[144,128]{1,0:T(1,128)}', space=vmem, size = 0x12000, scoped, tag = 'internal scratch']
  #allocation2 [shape = 'f32[1]{0:T(128)S(6)}', space=smem, size = 0x200, scoped, tag = 'scoped memory for lccd_forward.39']
  %s0 = inlined_call_operand.vmem [shape: f32[64,1], index: 0, kind: input, shape index: {}]
  %s1 = inlined_call_operand.vmem [shape: f32[64,1], index: 1, kind: input, shape index: {}]
  %s2 = inlined_call_operand.vmem [shape: f32[64,128], index: 2, kind: input, shape index: {}]
  %s3 = inlined_call_operand.vmem [shape: f32[64,128], index: 3, kind: input, shape index: {}]
  %s4 = inlined_call_operand.vmem [shape: f32[64,128], index: 4, kind: input, shape index: {}]
  %s5 = inlined_call_operand.vmem [shape: f32[9,128], index: 5, kind: input, shape index: {}]
  %s6 = inlined_call_operand.vmem [shape: f32[9,128], index: 6, kind: input, shape index: {}]
  %s7 = inlined_call_operand.<no memory space> [shape: f32[1], index: 7, kind: input, shape index: {}]
  %s8 = inlined_call_operand.vmem [shape: f32[64,16], index: 8, kind: output, shape index: {}]
  %s9 = sld [smem:[#allocation0]]
  $region65: #{lccd_forward.39} parent=0
    _
  %s11 = ssub.s32 1, %s9
  %s12 = scalar_select 0, %s11, %s9
  %13 = sst [smem:[#allocation2]] %s7
  loop: start=0, step=1, limit=4
  $region2: #{lccd_forward.39} parent=0 // loop_pre_header
    _
  $region3: #{lccd_forward.39} parent=0 // loop_header
    %s15 = sphi 0, %s19
    %p16 = scmp.ge.s32.totalorder %s15, 4
    %s25 = sphi 0, %s27
    %s28 = sphi 0, %s25
    %s29 = sphi 0, %s28
    %s45 = sphi 0, %s29
    %s51 = sphi 0, %s53
    %s54 = sphi 0, %s51
    %s55 = sphi 0, %s54
    %s71 = sphi 0, %s55
    %s77 = sphi 0, %s79
    %s80 = sphi 0, %s77
    %s81 = sphi 0, %s80
    %s97 = sphi 0, %s81
    %s103 = sphi 0, %s105
    %s106 = sphi 0, %s103
    %s107 = sphi 0, %s106
    %s123 = sphi 0, %s107
    %s129 = sphi 0, %s131
    %s132 = sphi 0, %s129
    %s133 = sphi 0, %s132
    %s149 = sphi 0, %s133
    %s153 = sphi 0, %s153
    %s155 = sphi 0, %s153
    %s156 = sphi 0, %s155
    %s170 = sphi 0, %s156
    %s174 = sphi 0, %s174
    %s176 = sphi 0, %s174
    %s177 = sphi 0, %s176
    %s191 = sphi 0, %s177
    %s195 = sphi 0, %s195
    %s197 = sphi 0, %s195
    %s198 = sphi 0, %s197
    %s212 = sphi 0, %s198
    %s218 = sphi 0, %s220
    %s221 = sphi 0, %s218
    %s222 = sphi 0, %s221
    %s238 = sphi 0, %s222
  $region4: #{lccd_forward.39} parent=0 // loop_header_branch
    %18 = sbr.rel (%p16) target = $region8
  $region5: #{lccd_forward.39} parent=0 // loop_body
    %s20 = ssub.s32 %s15, 1
    %s21 = ssub.s32 %s15, 2
    %s22 = sadd.s32 %s15, 1
    %s23 = ssub.s32 %s15, %s22
    %p24 = scmp.eq.s32.totalorder %s23, 0
    %s26 = sadd.s32 %s25, 1
    %s27 = scalar_select %p24, %s25, %s26
    %p30 = pneg %p24
    %p31 = scmp.eq.s32.totalorder %s15, 1
    %p32 = por %p30, %p31
    %p33 = scmp.ne.s32.totalorder %s25, %s28
    %p34 = scmp.eq.s32.totalorder %s15, 0
    %p35 = por %p33, %p34
    %p36 = scmp.ne.s32.totalorder %s25, %s28
    %p37 = scmp.eq.s32.totalorder %s20, 1
    %p38 = por %p36, %p37
    %p39 = scmp.ne.s32.totalorder %s28, %s29
    %p40 = scmp.eq.s32.totalorder %s20, 0
    %p41 = por %p39, %p40
    %p42 = scmp.ne.s32.totalorder %s28, %s29
    %p43 = scmp.eq.s32.totalorder %s21, 1
    %p44 = por %p42, %p43
    %p46 = scmp.ne.s32.totalorder %s29, %s45
    %p47 = scmp.eq.s32.totalorder %s21, 0
    %p48 = por %p46, %p47
    %s49 = ssub.s32 %s15, %s22
    %p50 = scmp.eq.s32.totalorder %s49, 0
    %s52 = sadd.s32 %s51, 1
    %s53 = scalar_select %p50, %s51, %s52
    %p56 = pneg %p50
    %p57 = scmp.eq.s32.totalorder %s15, 1
    %p58 = por %p56, %p57
    %p59 = scmp.ne.s32.totalorder %s51, %s54
    %p60 = scmp.eq.s32.totalorder %s15, 0
    %p61 = por %p59, %p60
    %p62 = scmp.ne.s32.totalorder %s51, %s54
    %p63 = scmp.eq.s32.totalorder %s20, 1
    %p64 = por %p62, %p63
    %p65 = scmp.ne.s32.totalorder %s54, %s55
    %p66 = scmp.eq.s32.totalorder %s20, 0
    %p67 = por %p65, %p66
    %p68 = scmp.ne.s32.totalorder %s54, %s55
    %p69 = scmp.eq.s32.totalorder %s21, 1
    %p70 = por %p68, %p69
    %p72 = scmp.ne.s32.totalorder %s55, %s71
    %p73 = scmp.eq.s32.totalorder %s21, 0
    %p74 = por %p72, %p73
    %s75 = ssub.s32 %s15, %s22
    %p76 = scmp.eq.s32.totalorder %s75, 0
    %s78 = sadd.s32 %s77, 1
    %s79 = scalar_select %p76, %s77, %s78
    %p82 = pneg %p76
    %p83 = scmp.eq.s32.totalorder %s15, 1
    %p84 = por %p82, %p83
    %p85 = scmp.ne.s32.totalorder %s77, %s80
    %p86 = scmp.eq.s32.totalorder %s15, 0
    %p87 = por %p85, %p86
    %p88 = scmp.ne.s32.totalorder %s77, %s80
    %p89 = scmp.eq.s32.totalorder %s20, 1
    %p90 = por %p88, %p89
    %p91 = scmp.ne.s32.totalorder %s80, %s81
    %p92 = scmp.eq.s32.totalorder %s20, 0
    %p93 = por %p91, %p92
    %p94 = scmp.ne.s32.totalorder %s80, %s81
    %p95 = scmp.eq.s32.totalorder %s21, 1
    %p96 = por %p94, %p95
    %p98 = scmp.ne.s32.totalorder %s81, %s97
    %p99 = scmp.eq.s32.totalorder %s21, 0
    %p100 = por %p98, %p99
    %s101 = ssub.s32 %s15, %s22
    %p102 = scmp.eq.s32.totalorder %s101, 0
    %s104 = sadd.s32 %s103, 1
    %s105 = scalar_select %p102, %s103, %s104
    %p108 = pneg %p102
    %p109 = scmp.eq.s32.totalorder %s15, 1
    %p110 = por %p108, %p109
    %p111 = scmp.ne.s32.totalorder %s103, %s106
    %p112 = scmp.eq.s32.totalorder %s15, 0
    %p113 = por %p111, %p112
    %p114 = scmp.ne.s32.totalorder %s103, %s106
    %p115 = scmp.eq.s32.totalorder %s20, 1
    %p116 = por %p114, %p115
    %p117 = scmp.ne.s32.totalorder %s106, %s107
    %p118 = scmp.eq.s32.totalorder %s20, 0
    %p119 = por %p117, %p118
    %p120 = scmp.ne.s32.totalorder %s106, %s107
    %p121 = scmp.eq.s32.totalorder %s21, 1
    %p122 = por %p120, %p121
    %p124 = scmp.ne.s32.totalorder %s107, %s123
    %p125 = scmp.eq.s32.totalorder %s21, 0
    %p126 = por %p124, %p125
    %s127 = ssub.s32 %s15, %s22
    %p128 = scmp.eq.s32.totalorder %s127, 0
    %s130 = sadd.s32 %s129, 1
    %s131 = scalar_select %p128, %s129, %s130
    %p134 = pneg %p128
    %p135 = scmp.eq.s32.totalorder %s15, 1
    %p136 = por %p134, %p135
    %p137 = scmp.ne.s32.totalorder %s129, %s132
    %p138 = scmp.eq.s32.totalorder %s15, 0
    %p139 = por %p137, %p138
    %p140 = scmp.ne.s32.totalorder %s129, %s132
    %p141 = scmp.eq.s32.totalorder %s20, 1
    %p142 = por %p140, %p141
    %p143 = scmp.ne.s32.totalorder %s132, %s133
    %p144 = scmp.eq.s32.totalorder %s20, 0
    %p145 = por %p143, %p144
    %p146 = scmp.ne.s32.totalorder %s132, %s133
    %p147 = scmp.eq.s32.totalorder %s21, 1
    %p148 = por %p146, %p147
    %p150 = scmp.ne.s32.totalorder %s133, %s149
    %p151 = scmp.eq.s32.totalorder %s21, 0
    %p152 = por %p150, %p151
    %s154 = sadd.s32 %s153, 1
    %p157 = scmp.eq.s32.totalorder %s15, 1
    %p158 = scmp.ne.s32.totalorder %s153, %s155
    %p159 = scmp.eq.s32.totalorder %s15, 0
    %p160 = por %p158, %p159
    %p161 = scmp.ne.s32.totalorder %s153, %s155
    %p162 = scmp.eq.s32.totalorder %s20, 1
    %p163 = por %p161, %p162
    %p164 = scmp.ne.s32.totalorder %s155, %s156
    %p165 = scmp.eq.s32.totalorder %s20, 0
    %p166 = por %p164, %p165
    %p167 = scmp.ne.s32.totalorder %s155, %s156
    %p168 = scmp.eq.s32.totalorder %s21, 1
    %p169 = por %p167, %p168
    %p171 = scmp.ne.s32.totalorder %s156, %s170
    %p172 = scmp.eq.s32.totalorder %s21, 0
    %p173 = por %p171, %p172
    %s175 = sadd.s32 %s174, 1
    %p178 = scmp.eq.s32.totalorder %s15, 1
    %p179 = scmp.ne.s32.totalorder %s174, %s176
    %p180 = scmp.eq.s32.totalorder %s15, 0
    %p181 = por %p179, %p180
    %p182 = scmp.ne.s32.totalorder %s174, %s176
    %p183 = scmp.eq.s32.totalorder %s20, 1
    %p184 = por %p182, %p183
    %p185 = scmp.ne.s32.totalorder %s176, %s177
    %p186 = scmp.eq.s32.totalorder %s20, 0
    %p187 = por %p185, %p186
    %p188 = scmp.ne.s32.totalorder %s176, %s177
    %p189 = scmp.eq.s32.totalorder %s21, 1
    %p190 = por %p188, %p189
    %p192 = scmp.ne.s32.totalorder %s177, %s191
    %p193 = scmp.eq.s32.totalorder %s21, 0
    %p194 = por %p192, %p193
    %s196 = sadd.s32 %s195, 1
    %p199 = scmp.eq.s32.totalorder %s15, 1
    %p200 = scmp.ne.s32.totalorder %s195, %s197
    %p201 = scmp.eq.s32.totalorder %s15, 0
    %p202 = por %p200, %p201
    %p203 = scmp.ne.s32.totalorder %s195, %s197
    %p204 = scmp.eq.s32.totalorder %s20, 1
    %p205 = por %p203, %p204
    %p206 = scmp.ne.s32.totalorder %s197, %s198
    %p207 = scmp.eq.s32.totalorder %s20, 0
    %p208 = por %p206, %p207
    %p209 = scmp.ne.s32.totalorder %s197, %s198
    %p210 = scmp.eq.s32.totalorder %s21, 1
    %p211 = por %p209, %p210
    %p213 = scmp.ne.s32.totalorder %s198, %s212
    %p214 = scmp.eq.s32.totalorder %s21, 0
    %p215 = por %p213, %p214
    %s216 = ssub.s32 %s15, %s22
    %p217 = scmp.eq.s32.totalorder %s216, 0
    %s219 = sadd.s32 %s218, 1
    %s220 = scalar_select %p217, %s218, %s219
    %p223 = pneg %p217
    %p224 = scmp.eq.s32.totalorder %s15, 1
    %p225 = por %p223, %p224
    %p226 = scmp.ne.s32.totalorder %s218, %s221
    %p227 = scmp.eq.s32.totalorder %s15, 0
    %p228 = por %p226, %p227
    %p229 = scmp.ne.s32.totalorder %s218, %s221
    %p230 = scmp.eq.s32.totalorder %s20, 1
    %p231 = por %p229, %p230
    %p232 = scmp.ne.s32.totalorder %s221, %s222
    %p233 = scmp.eq.s32.totalorder %s20, 0
    %p234 = por %p232, %p233
    %p235 = scmp.ne.s32.totalorder %s221, %s222
    %p236 = scmp.eq.s32.totalorder %s21, 1
    %p237 = por %p235, %p236
    %p239 = scmp.ne.s32.totalorder %s222, %s238
    %p240 = scmp.eq.s32.totalorder %s21, 0
    %p241 = por %p239, %p240
    %p242 = scmp.le.s32.totalorder 1, %s15
    %p243 = scmp.lt.s32.totalorder %s15, 3
    %p244 = pnand %p242, %p243
    %p245 = pneg %p244
    // Predicated region
    $region9: #{lccd_forward.39} parent=5 // pred_check
      _
    $region10: #{lccd_forward.39} parent=5 // pred_check_branch
      %247 = sbr.rel (%p244) target = $region12
    $region11: #{lccd_forward.39} parent=5 // pred_region
      %s248 = ssub.s32 %s15, 1
      // Predicated region
      $region13: #{lccd_forward.39} parent=11 // pred_check
        %p249 = pneg %p166
      $region14: #{lccd_forward.39} parent=11 // pred_check_branch
        %251 = sbr.rel (%p249) target = $region16
      $region15: #{lccd_forward.39} parent=11 // pred_region
        _
      $region16: #{lccd_forward.39} parent=11 // pred_fallthru
        _
      // Predicated region
      $region17: #{lccd_forward.39} parent=11 // pred_check
        %p252 = pneg %p187
      $region18: #{lccd_forward.39} parent=11 // pred_check_branch
        %254 = sbr.rel (%p252) target = $region20
      $region19: #{lccd_forward.39} parent=11 // pred_region
        _
      $region20: #{lccd_forward.39} parent=11 // pred_fallthru
        _
      // Predicated region
      $region21: #{lccd_forward.39} parent=11 // pred_check
        %p255 = pneg %p208
      $region22: #{lccd_forward.39} parent=11 // pred_check_branch
        %257 = sbr.rel (%p255) target = $region24
      $region23: #{lccd_forward.39} parent=11 // pred_region
        _
      $region24: #{lccd_forward.39} parent=11 // pred_fallthru
        _
    $region12: #{lccd_forward.39} parent=5 // pred_fallthru
      _
    %p258 = scmp.lt.s32.totalorder %s15, 2
    // Predicated region
    $region25: #{lccd_forward.39} parent=5 // pred_check
      %p259 = pneg %p258
    $region26: #{lccd_forward.39} parent=5 // pred_check_branch
      %261 = sbr.rel (%p259) target = $region28
    $region27: #{lccd_forward.39} parent=5 // pred_region
      // Predicated region
      $region29: #{lccd_forward.39} parent=27 // pred_check
        %p262 = pneg %p35
      $region30: #{lccd_forward.39} parent=27 // pred_check_branch
        %264 = sbr.rel (%p262) target = $region32
      $region31: #{lccd_forward.39} parent=27 // pred_region
        %s265 = smul.u32 4, %s15
        %p266 = scmp.lt.s32.totalorder %s265, 7
        %s267 = scalar_select %p266, %s265, 7
        %s268 = smul.addr %s267, 8
        %s269 = scalar_lea.vmem %s0, %s268
        %s270 = smul.u32 4, %s15
      $region32: #{lccd_forward.39} parent=27 // pred_fallthru
        _
      // Predicated region
      $region33: #{lccd_forward.39} parent=27 // pred_check
        %p271 = pneg %p61
      $region34: #{lccd_forward.39} parent=27 // pred_check_branch
        %273 = sbr.rel (%p271) target = $region36
      $region35: #{lccd_forward.39} parent=27 // pred_region
        %s274 = smul.u32 4, %s15
        %p275 = scmp.lt.s32.totalorder %s274, 7
        %s276 = scalar_select %p275, %s274, 7
        %s277 = smul.addr %s276, 8
        %s278 = scalar_lea.vmem %s1, %s277
        %s279 = smul.u32 4, %s15
      $region36: #{lccd_forward.39} parent=27 // pred_fallthru
        _
      // Predicated region
      $region37: #{lccd_forward.39} parent=27 // pred_check
        %p280 = pneg %p87
      $region38: #{lccd_forward.39} parent=27 // pred_check_branch
        %282 = sbr.rel (%p280) target = $region40
      $region39: #{lccd_forward.39} parent=27 // pred_region
        %s283 = smul.u32 4, %s15
        %p284 = scmp.lt.s32.totalorder %s283, 7
        %s285 = scalar_select %p284, %s283, 7
        %s286 = smul.addr %s285, 8
        %s287 = scalar_lea.vmem %s2, %s286
        %s288 = smul.u32 4, %s15
      $region40: #{lccd_forward.39} parent=27 // pred_fallthru
        _
      // Predicated region
      $region41: #{lccd_forward.39} parent=27 // pred_check
        %p289 = pneg %p113
      $region42: #{lccd_forward.39} parent=27 // pred_check_branch
        %291 = sbr.rel (%p289) target = $region44
      $region43: #{lccd_forward.39} parent=27 // pred_region
        %s292 = smul.u32 4, %s15
        %p293 = scmp.lt.s32.totalorder %s292, 7
        %s294 = scalar_select %p293, %s292, 7
        %s295 = smul.addr %s294, 8
        %s296 = scalar_lea.vmem %s3, %s295
        %s297 = smul.u32 4, %s15
      $region44: #{lccd_forward.39} parent=27 // pred_fallthru
        _
      // Predicated region
      $region45: #{lccd_forward.39} parent=27 // pred_check
        %p298 = pneg %p139
      $region46: #{lccd_forward.39} parent=27 // pred_check_branch
        %300 = sbr.rel (%p298) target = $region48
      $region47: #{lccd_forward.39} parent=27 // pred_region
        %s301 = smul.u32 4, %s15
        %p302 = scmp.lt.s32.totalorder %s301, 7
        %s303 = scalar_select %p302, %s301, 7
        %s304 = smul.addr %s303, 8
        %s305 = scalar_lea.vmem %s4, %s304
        %s306 = smul.u32 4, %s15
      $region48: #{lccd_forward.39} parent=27 // pred_fallthru
        _
    $region28: #{lccd_forward.39} parent=5 // pred_fallthru
      _
    %p307 = scmp.le.s32.totalorder 1, %s15
    %p308 = scmp.lt.s32.totalorder %s15, 3
    %p309 = pnand %p307, %p308
    %p310 = pneg %p309
    // Predicated region
    $region49: #{lccd_forward.39} parent=5 // pred_check
      _
    $region50: #{lccd_forward.39} parent=5 // pred_check_branch
      %312 = sbr.rel (%p309) target = $region52
    $region51: #{lccd_forward.39} parent=5 // pred_region
      %s313 = ssub.s32 %s15, 1
      %s314 = smul.u32 4, %s20
      %p315 = scmp.lt.s32.totalorder %s314, 7
      %s316 = scalar_select %p315, %s314, 7
      %s317 = smul.addr %s316, 8
      %s318 = scalar_lea.vmem %s0, %s317
      %p319 = pneg %p41
      %p320 = pneg %p38
      %s321 = smul.u32 4, %s20
      %p322 = scmp.lt.s32.totalorder %s321, 7
      %s323 = scalar_select %p322, %s321, 7
      %s324 = smul.addr %s323, 8
      %s325 = scalar_lea.vmem %s1, %s324
      %p326 = pneg %p67
      %p327 = pneg %p64
      %s328 = smul.u32 4, %s20
      %p329 = scmp.lt.s32.totalorder %s328, 7
      %s330 = scalar_select %p329, %s328, 7
      %s331 = smul.addr %s330, 8
      %s332 = scalar_lea.vmem %s2, %s331
      %p333 = pneg %p93
      %p334 = pneg %p90
      %s335 = smul.u32 4, %s20
      %p336 = scmp.lt.s32.totalorder %s335, 7
      %s337 = scalar_select %p336, %s335, 7
      %s338 = smul.addr %s337, 8
      %s339 = scalar_lea.vmem %s3, %s338
      %p340 = pneg %p119
      %p341 = pneg %p116
      %s342 = smul.u32 4, %s20
      %p343 = scmp.lt.s32.totalorder %s342, 7
      %s344 = scalar_select %p343, %s342, 7
      %s345 = smul.addr %s344, 8
      %s346 = scalar_lea.vmem %s4, %s345
      %p347 = pneg %p145
      %p348 = pneg %p142
      %p349 = pneg %p166
      %p350 = pneg %p163
      %p351 = pneg %p187
      %p352 = pneg %p184
      %p353 = pneg %p208
      %p354 = pneg %p205
      %p355 = pneg %p234
      %p356 = pneg %p231
      %s357 = smul.u32 4, %s20
      %p358 = scmp.lt.s32.totalorder %s357, 7
      %s359 = scalar_select %p358, %s357, 7
      %s360 = smul.addr %s359, 8
      %s361 = scalar_lea.vmem %s8, %s360
      %s362 = smul.u32 4, %s20
      %p363 = scmp.lt.s32.totalorder %s362, 7
      %s364 = scalar_select %p363, %s362, 7
      %s365 = smul.addr %s364, 8
      %s366 = scalar_lea.vmem %s0, %s365
      %s367 = smul.u32 4, %s20
      %s368 = smul.u32 4, %s20
      %p369 = scmp.lt.s32.totalorder %s368, 7
      %s370 = scalar_select %p369, %s368, 7
      %s371 = smul.addr %s370, 8
      %s372 = scalar_lea.vmem %s1, %s371
      %s373 = smul.u32 4, %s20
      %s374 = smul.u32 4, %s20
      %p375 = scmp.lt.s32.totalorder %s374, 7
      %s376 = scalar_select %p375, %s374, 7
      %s377 = smul.addr %s376, 8
      %s378 = scalar_lea.vmem %s2, %s377
      %s379 = smul.u32 4, %s20
      %s380 = smul.u32 4, %s20
      %p381 = scmp.lt.s32.totalorder %s380, 7
      %s382 = scalar_select %p381, %s380, 7
      %s383 = smul.addr %s382, 8
      %s384 = scalar_lea.vmem %s3, %s383
      %s385 = smul.u32 4, %s20
      %s386 = smul.u32 4, %s20
      %p387 = scmp.lt.s32.totalorder %s386, 7
      %s388 = scalar_select %p387, %s386, 7
      %s389 = smul.addr %s388, 8
      %s390 = scalar_lea.vmem %s4, %s389
      %s391 = smul.u32 4, %s20
      %s392 = smul.u32 4, %s20
      %p393 = scmp.lt.s32.totalorder %s392, 7
      %s394 = scalar_select %p393, %s392, 7
      %s395 = smul.addr %s394, 8
      %s396 = scalar_lea.vmem %s8, %s395
      %s397 = smul.u32 4, %s20
      %v398 = vld [vmem:[%s366] sm:$0xff]
      %v399 = vld [vmem:[%s366 + $0x8] sm:$0xff]
      %v400 = vld [vmem:[%s366 + $0x10] sm:$0xff]
      %v401 = vld [vmem:[%s366 + $0x18] sm:$0xff]
      %v402 = vld [vmem:[%s378] sm:$0xff]
      %v403 = vld [vmem:[%s378 + $0x8] sm:$0xff]
      %v404 = vld [vmem:[%s378 + $0x10] sm:$0xff]
      %v405 = vld [vmem:[%s378 + $0x18] sm:$0xff]
      %407 = vset.pattern.permute.xlu0 0
      %408 = vperm.xlu0 %407, %v398
      %v409 = vpop.permute.xlu0 %408
      %412 = vset.pattern.permute.xlu0 0
      %413 = vperm.xlu0 %412, %v399
      %v414 = vpop.permute.xlu0 %413
      %417 = vset.pattern.permute.xlu0 0
      %418 = vperm.xlu0 %417, %v400
      %v419 = vpop.permute.xlu0 %418
      %422 = vset.pattern.permute.xlu0 0
      %423 = vperm.xlu0 %422, %v401
      %v424 = vpop.permute.xlu0 %423
      %v426 = vmul.f32 %v409, %v402
      %v427 = vmul.f32 %v414, %v403
      %v428 = vmul.f32 %v419, %v404
      %v429 = vmul.f32 %v424, %v405
      %v430 = vld [vmem:[%s372] sm:$0xff]
      %v431 = vld [vmem:[%s372 + $0x8] sm:$0xff]
      %v432 = vld [vmem:[%s372 + $0x10] sm:$0xff]
      %v433 = vld [vmem:[%s372 + $0x18] sm:$0xff]
      %v434 = vld [vmem:[%s384] sm:$0xff]
      %v435 = vld [vmem:[%s384 + $0x8] sm:$0xff]
      %v436 = vld [vmem:[%s384 + $0x10] sm:$0xff]
      %v437 = vld [vmem:[%s384 + $0x18] sm:$0xff]
      %439 = vset.pattern.permute.xlu0 0
      %440 = vperm.xlu0 %439, %v430
      %v441 = vpop.permute.xlu0 %440
      %444 = vset.pattern.permute.xlu0 0
      %445 = vperm.xlu0 %444, %v431
      %v446 = vpop.permute.xlu0 %445
      %449 = vset.pattern.permute.xlu0 0
      %450 = vperm.xlu0 %449, %v432
      %v451 = vpop.permute.xlu0 %450
      %454 = vset.pattern.permute.xlu0 0
      %455 = vperm.xlu0 %454, %v433
      %v456 = vpop.permute.xlu0 %455
      %v458 = vmul.f32 %v441, %v434
      %v459 = vmul.f32 %v446, %v435
      %v460 = vmul.f32 %v451, %v436
      %v461 = vmul.f32 %v456, %v437
      %v462 = vadd.f32 %v426, %v458
      %v463 = vadd.f32 %v427, %v459
      %v464 = vadd.f32 %v428, %v460
      %v465 = vadd.f32 %v429, %v461
      %v466 = vlaneseq
      %v467 = vshrl.u32 %v466, 7
      %v468 = vadd.s32 %v467, 8
      %v469 = vadd.s32 %v467, 16
      %v470 = vadd.s32 %v467, 24
      %vm471 = vcmp.lt.s32.totalorder %v467, 0
      %v472 = vsub.s32 0, %v467
      %v473 = vsel %vm471, %v472, %v467
      %v474 = vshrl.u32 %v473, 4
      %v475 = vand.u32 %v473, 15
      %v476 = vsub.s32 0, %v475
      %v477 = vsel %vm471, %v476, %v475
      %vm478 = vcmp.lt.s32.totalorder %v468, 0
      %v479 = vsub.s32 0, %v468
      %v480 = vsel %vm478, %v479, %v468
      %v481 = vshrl.u32 %v480, 4
      %v482 = vand.u32 %v480, 15
      %v483 = vsub.s32 0, %v482
      %v484 = vsel %vm478, %v483, %v482
      %vm485 = vcmp.lt.s32.totalorder %v469, 0
      %v486 = vsub.s32 0, %v469
      %v487 = vsel %vm485, %v486, %v469
      %v488 = vshrl.u32 %v487, 4
      %v489 = vand.u32 %v487, 15
      %v490 = vsub.s32 0, %v489
      %v491 = vsel %vm485, %v490, %v489
      %vm492 = vcmp.lt.s32.totalorder %v470, 0
      %v493 = vsub.s32 0, %v470
      %v494 = vsel %vm492, %v493, %v470
      %v495 = vshrl.u32 %v494, 4
      %v496 = vand.u32 %v494, 15
      %v497 = vsub.s32 0, %v496
      %v498 = vsel %vm492, %v497, %v496
      %vm499 = vcmp.ne.s32.totalorder %v477, 0
      %vm500 = vcmp.ne.s32.totalorder %v484, 0
      %vm501 = vcmp.ne.s32.totalorder %v491, 0
      %vm502 = vcmp.ne.s32.totalorder %v498, 0
      %vm503 = vcmp.lt.s32.totalorder %v477, 0
      %vm504 = vcmp.lt.s32.totalorder %v484, 0
      %vm505 = vcmp.lt.s32.totalorder %v491, 0
      %vm506 = vcmp.lt.s32.totalorder %v498, 0
      %vm507 = vmand %vm503, %vm499
      %vm508 = vmand %vm504, %vm500
      %vm509 = vmand %vm505, %vm501
      %vm510 = vmand %vm506, %vm502
      %v511 = vadd.s32 %v477, 16
      %v512 = vadd.s32 %v484, 16
      %v513 = vadd.s32 %v491, 16
      %v514 = vadd.s32 %v498, 16
      %v515 = vsel %vm507, %v511, %v477
      %v516 = vsel %vm508, %v512, %v484
      %v517 = vsel %vm509, %v513, %v491
      %v518 = vsel %vm510, %v514, %v498
      %v519 = vlaneseq
      %v520 = vand.u32 %v519, 127
      %vm521 = vcmp.lt.s32.totalorder %v520, 0
      %v522 = vsub.s32 0, %v520
      %v523 = vsel %vm521, %v522, %v520
      %v524 = vshrl.u32 %v523, 4
      %v525 = vand.u32 %v523, 15
      %v526 = vsub.s32 0, %v525
      %v527 = vsel %vm521, %v526, %v525
      %vm528 = vcmp.ne.s32.totalorder %v527, 0
      %vm529 = vcmp.lt.s32.totalorder %v527, 0
      %vm530 = vmand %vm529, %vm528
      %v531 = vadd.s32 %v527, 16
      %v532 = vsel %vm530, %v531, %v527
      %vm533 = vcmp.ne.s32.totalorder %v515, 0
      %vm534 = vcmp.ne.s32.totalorder %v516, 0
      %vm535 = vcmp.ne.s32.totalorder %v517, 0
      %vm536 = vcmp.ne.s32.totalorder %v518, 0
      %v537 = vsel %vm533, 1, 0
      %v538 = vsel %vm534, 1, 0
      %v539 = vsel %vm535, 1, 0
      %v540 = vsel %vm536, 1, 0
      %v541 = vcvt.s32.f32 %v537
      %v542 = vcvt.s32.f32 %v538
      %v543 = vcvt.s32.f32 %v539
      %v544 = vcvt.s32.f32 %v540
      %vm545 = vcmp.ne.s32.totalorder %v515, 15
      %vm546 = vcmp.ne.s32.totalorder %v516, 15
      %vm547 = vcmp.ne.s32.totalorder %v517, 15
      %vm548 = vcmp.ne.s32.totalorder %v518, 15
      %v549 = vsel %vm545, 1, 0
      %v550 = vsel %vm546, 1, 0
      %v551 = vsel %vm547, 1, 0
      %v552 = vsel %vm548, 1, 0
      %v553 = vcvt.s32.f32 %v549
      %v554 = vcvt.s32.f32 %v550
      %v555 = vcvt.s32.f32 %v551
      %v556 = vcvt.s32.f32 %v552
      %vm557 = vcmp.ne.s32.totalorder %v532, 0
      %v558 = vsel %vm557, 1, 0
      %v559 = vcvt.s32.f32 %v558
      %vm560 = vcmp.ne.s32.totalorder %v532, 15
      %v561 = vsel %vm560, 1, 0
      %v562 = vcvt.s32.f32 %v561
      %v563 = vld [vmem:[%s390] sm:$0xff]
      %v564 = vld [vmem:[%s390 + $0x8] sm:$0xff]
      %v565 = vld [vmem:[%s390 + $0x10] sm:$0xff]
      %v566 = vld [vmem:[%s390 + $0x18] sm:$0xff]
      %v567 = vrot.slane %v462, 7
      %v568 = vrot.slane %v463, 7
      %v569 = vrot.slane %v464, 7
      %v570 = vrot.slane %v465, 7
      %vm571 = vcmp.lt.s32.totalorder %v467, 1
      %v572 = vsel %vm571, %v569, %v570
      %v573 = vsel %vm571, %v568, %v569
      %v574 = vsel %vm571, %v567, %v568
      %v575 = vsel %vm571, %v570, %v567
      %v576 = vmul.f32 %v575, %v541
      %v577 = vmul.f32 %v574, %v542
      %v578 = vmul.f32 %v573, %v543
      %v579 = vmul.f32 %v572, %v544
      %580 = vrot.lane.b32.xlu0 %v576, 1
      %v581 = vpop.permute.xlu0 %580
      %582 = vrot.lane.b32.xlu0 %v577, 1
      %v583 = vpop.permute.xlu0 %582
      %584 = vrot.lane.b32.xlu0 %v578, 1
      %v585 = vpop.permute.xlu0 %584
      %586 = vrot.lane.b32.xlu0 %v579, 1
      %v587 = vpop.permute.xlu0 %586
      %v588 = vmul.f32 %v581, %v559
      %v589 = vmul.f32 %v583, %v559
      %v590 = vmul.f32 %v585, %v559
      %v591 = vmul.f32 %v587, %v559
      %v592 = vld [vmem:[%s5] sm:$0x1]
      %v593 = vlaneseq
      %v594 = vshrl.u32 %v593, 7
      %v595 = vsub.s32 0, %v594
      %v596 = vrot.slane %v592, %v595
      %v597 = vmul.f32 %v596, %v588
      %v598 = vmul.f32 %v596, %v589
      %v599 = vmul.f32 %v596, %v590
      %v600 = vmul.f32 %v596, %v591
      %v601 = vadd.f32 %v563, %v597
      %v602 = vadd.f32 %v564, %v598
      %v603 = vadd.f32 %v565, %v599
      %v604 = vadd.f32 %v566, %v600
      %v605 = vld [vmem:[%s5 + $0x1] sm:$0x1]
      %v606 = vlaneseq
      %v607 = vshrl.u32 %v606, 7
      %v608 = vsub.s32 0, %v607
      %v609 = vrot.slane %v605, %v608
      %v610 = vmul.f32 %v609, %v576
      %v611 = vmul.f32 %v609, %v577
      %v612 = vmul.f32 %v609, %v578
      %v613 = vmul.f32 %v609, %v579
      %v614 = vadd.f32 %v601, %v610
      %v615 = vadd.f32 %v602, %v611
      %v616 = vadd.f32 %v603, %v612
      %v617 = vadd.f32 %v604, %v613
      %618 = vrot.lane.b32.xlu0 %v576, 127
      %v619 = vpop.permute.xlu0 %618
      %620 = vrot.lane.b32.xlu0 %v577, 127
      %v621 = vpop.permute.xlu0 %620
      %622 = vrot.lane.b32.xlu0 %v578, 127
      %v623 = vpop.permute.xlu0 %622
      %624 = vrot.lane.b32.xlu0 %v579, 127
      %v625 = vpop.permute.xlu0 %624
      %v626 = vmul.f32 %v619, %v562
      %v627 = vmul.f32 %v621, %v562
      %v628 = vmul.f32 %v623, %v562
      %v629 = vmul.f32 %v625, %v562
      %v630 = vld [vmem:[%s5 + $0x2] sm:$0x1]
      %v631 = vlaneseq
      %v632 = vshrl.u32 %v631, 7
      %v633 = vsub.s32 0, %v632
      %v634 = vrot.slane %v630, %v633
      %v635 = vmul.f32 %v634, %v626
      %v636 = vmul.f32 %v634, %v627
      %v637 = vmul.f32 %v634, %v628
      %v638 = vmul.f32 %v634, %v629
      %v639 = vadd.f32 %v614, %v635
      %v640 = vadd.f32 %v615, %v636
      %v641 = vadd.f32 %v616, %v637
      %v642 = vadd.f32 %v617, %v638
      %643 = vrot.lane.b32.xlu0 %v462, 1
      %v644 = vpop.permute.xlu0 %643
      %645 = vrot.lane.b32.xlu0 %v463, 1
      %v646 = vpop.permute.xlu0 %645
      %647 = vrot.lane.b32.xlu0 %v464, 1
      %v648 = vpop.permute.xlu0 %647
      %649 = vrot.lane.b32.xlu0 %v465, 1
      %v650 = vpop.permute.xlu0 %649
      %v651 = vmul.f32 %v644, %v559
      %v652 = vmul.f32 %v646, %v559
      %v653 = vmul.f32 %v648, %v559
      %v654 = vmul.f32 %v650, %v559
      %v655 = vld [vmem:[%s5 + $0x3] sm:$0x1]
      %v656 = vlaneseq
      %v657 = vshrl.u32 %v656, 7
      %v658 = vsub.s32 0, %v657
      %v659 = vrot.slane %v655, %v658
      %v660 = vmul.f32 %v659, %v651
      %v661 = vmul.f32 %v659, %v652
      %v662 = vmul.f32 %v659, %v653
      %v663 = vmul.f32 %v659, %v654
      %v664 = vadd.f32 %v639, %v660
      %v665 = vadd.f32 %v640, %v661
      %v666 = vadd.f32 %v641, %v662
      %v667 = vadd.f32 %v642, %v663
      %v668 = vld [vmem:[%s5 + $0x4] sm:$0x1]
      %v669 = vlaneseq
      %v670 = vshrl.u32 %v669, 7
      %v671 = vsub.s32 0, %v670
      %v672 = vrot.slane %v668, %v671
      %v673 = vmul.f32 %v672, %v462
      %v674 = vmul.f32 %v672, %v463
      %v675 = vmul.f32 %v672, %v464
      %v676 = vmul.f32 %v672, %v465
      %v677 = vadd.f32 %v664, %v673
      %v678 = vadd.f32 %v665, %v674
      %v679 = vadd.f32 %v666, %v675
      %v680 = vadd.f32 %v667, %v676
      %681 = vrot.lane.b32.xlu0 %v462, 127
      %v682 = vpop.permute.xlu0 %681
      %683 = vrot.lane.b32.xlu0 %v463, 127
      %v684 = vpop.permute.xlu0 %683
      %685 = vrot.lane.b32.xlu0 %v464, 127
      %v686 = vpop.permute.xlu0 %685
      %687 = vrot.lane.b32.xlu0 %v465, 127
      %v688 = vpop.permute.xlu0 %687
      %v689 = vmul.f32 %v682, %v562
      %v690 = vmul.f32 %v684, %v562
      %v691 = vmul.f32 %v686, %v562
      %v692 = vmul.f32 %v688, %v562
      %v693 = vld [vmem:[%s5 + $0x5] sm:$0x1]
      %v694 = vlaneseq
      %v695 = vshrl.u32 %v694, 7
      %v696 = vsub.s32 0, %v695
      %v697 = vrot.slane %v693, %v696
      %v698 = vmul.f32 %v697, %v689
      %v699 = vmul.f32 %v697, %v690
      %v700 = vmul.f32 %v697, %v691
      %v701 = vmul.f32 %v697, %v692
      %v702 = vadd.f32 %v677, %v698
      %v703 = vadd.f32 %v678, %v699
      %v704 = vadd.f32 %v679, %v700
      %v705 = vadd.f32 %v680, %v701
      %v706 = vrot.slane %v462, 1
      %v707 = vrot.slane %v463, 1
      %v708 = vrot.slane %v464, 1
      %v709 = vrot.slane %v465, 1
      %vm710 = vcmp.lt.s32.totalorder %v467, 7
      %v711 = vsel %vm710, %v708, %v709
      %v712 = vsel %vm710, %v707, %v708
      %v713 = vsel %vm710, %v706, %v707
      %v714 = vsel %vm710, %v709, %v706
      %v715 = vmul.f32 %v713, %v553
      %v716 = vmul.f32 %v712, %v554
      %v717 = vmul.f32 %v711, %v555
      %v718 = vmul.f32 %v714, %v556
      %719 = vrot.lane.b32.xlu0 %v715, 1
      %v720 = vpop.permute.xlu0 %719
      %721 = vrot.lane.b32.xlu0 %v716, 1
      %v722 = vpop.permute.xlu0 %721
      %723 = vrot.lane.b32.xlu0 %v717, 1
      %v724 = vpop.permute.xlu0 %723
      %725 = vrot.lane.b32.xlu0 %v718, 1
      %v726 = vpop.permute.xlu0 %725
      %v727 = vmul.f32 %v720, %v559
      %v728 = vmul.f32 %v722, %v559
      %v729 = vmul.f32 %v724, %v559
      %v730 = vmul.f32 %v726, %v559
      %v731 = vld [vmem:[%s5 + $0x6] sm:$0x1]
      %v732 = vlaneseq
      %v733 = vshrl.u32 %v732, 7
      %v734 = vsub.s32 0, %v733
      %v735 = vrot.slane %v731, %v734
      %v736 = vmul.f32 %v735, %v727
      %v737 = vmul.f32 %v735, %v728
      %v738 = vmul.f32 %v735, %v729
      %v739 = vmul.f32 %v735, %v730
      %v740 = vadd.f32 %v702, %v736
      %v741 = vadd.f32 %v703, %v737
      %v742 = vadd.f32 %v704, %v738
      %v743 = vadd.f32 %v705, %v739
      %v744 = vld [vmem:[%s5 + $0x7] sm:$0x1]
      %v745 = vlaneseq
      %v746 = vshrl.u32 %v745, 7
      %v747 = vsub.s32 0, %v746
      %v748 = vrot.slane %v744, %v747
      %v749 = vmul.f32 %v748, %v715
      %v750 = vmul.f32 %v748, %v716
      %v751 = vmul.f32 %v748, %v717
      %v752 = vmul.f32 %v748, %v718
      %v753 = vadd.f32 %v740, %v749
      %v754 = vadd.f32 %v741, %v750
      %v755 = vadd.f32 %v742, %v751
      %v756 = vadd.f32 %v743, %v752
      %757 = vrot.lane.b32.xlu0 %v715, 127
      %v758 = vpop.permute.xlu0 %757
      %759 = vrot.lane.b32.xlu0 %v716, 127
      %v760 = vpop.permute.xlu0 %759
      %761 = vrot.lane.b32.xlu0 %v717, 127
      %v762 = vpop.permute.xlu0 %761
      %763 = vrot.lane.b32.xlu0 %v718, 127
      %v764 = vpop.permute.xlu0 %763
      %v765 = vmul.f32 %v758, %v562
      %v766 = vmul.f32 %v760, %v562
      %v767 = vmul.f32 %v762, %v562
      %v768 = vmul.f32 %v764, %v562
      %v769 = vld [vmem:[%s5 + $0x8] sm:$0x1]
      %v770 = vlaneseq
      %v771 = vshrl.u32 %v770, 7
      %v772 = vsub.s32 0, %v771
      %v773 = vrot.slane %v769, %v772
      %v774 = vmul.f32 %v773, %v765
      %v775 = vmul.f32 %v773, %v766
      %v776 = vmul.f32 %v773, %v767
      %v777 = vmul.f32 %v773, %v768
      %v778 = vadd.f32 %v753, %v774
      %v779 = vadd.f32 %v754, %v775
      %v780 = vadd.f32 %v755, %v776
      %v781 = vadd.f32 %v756, %v777
      %v782 = vmax.f32 %v778, 0.0
      %v783 = vmax.f32 %v779, 0.0
      %v784 = vmax.f32 %v780, 0.0
      %v785 = vmax.f32 %v781, 0.0
      %v786 = vrot.slane %v782, 7
      %v787 = vrot.slane %v783, 7
      %v788 = vrot.slane %v784, 7
      %v789 = vrot.slane %v785, 7
      %v790 = vsel %vm571, %v788, %v789
      %v791 = vsel %vm571, %v787, %v788
      %v792 = vsel %vm571, %v786, %v787
      %v793 = vsel %vm571, %v789, %v786
      %v794 = vmul.f32 %v793, %v541
      %v795 = vmul.f32 %v792, %v542
      %v796 = vmul.f32 %v791, %v543
      %v797 = vmul.f32 %v790, %v544
      %798 = vrot.lane.b32.xlu0 %v794, 1
      %v799 = vpop.permute.xlu0 %798
      %800 = vrot.lane.b32.xlu0 %v795, 1
      %v801 = vpop.permute.xlu0 %800
      %802 = vrot.lane.b32.xlu0 %v796, 1
      %v803 = vpop.permute.xlu0 %802
      %804 = vrot.lane.b32.xlu0 %v797, 1
      %v805 = vpop.permute.xlu0 %804
      %v806 = vmul.f32 %v799, %v559
      %v807 = vmul.f32 %v801, %v559
      %v808 = vmul.f32 %v803, %v559
      %v809 = vmul.f32 %v805, %v559
      %v810 = vld [vmem:[%s6] sm:$0x1]
      %v811 = vlaneseq
      %v812 = vshrl.u32 %v811, 7
      %v813 = vsub.s32 0, %v812
      %v814 = vrot.slane %v810, %v813
      %v815 = vmul.f32 %v814, %v806
      %v816 = vmul.f32 %v814, %v807
      %v817 = vmul.f32 %v814, %v808
      %v818 = vmul.f32 %v814, %v809
      %v819 = vadd.f32 %v815, 0.0
      %v820 = vadd.f32 %v816, 0.0
      %v821 = vadd.f32 %v817, 0.0
      %v822 = vadd.f32 %v818, 0.0
      %v823 = vld [vmem:[%s6 + $0x1] sm:$0x1]
      %v824 = vlaneseq
      %v825 = vshrl.u32 %v824, 7
      %v826 = vsub.s32 0, %v825
      %v827 = vrot.slane %v823, %v826
      %v828 = vmul.f32 %v827, %v794
      %v829 = vmul.f32 %v827, %v795
      %v830 = vmul.f32 %v827, %v796
      %v831 = vmul.f32 %v827, %v797
      %v832 = vadd.f32 %v819, %v828
      %v833 = vadd.f32 %v820, %v829
      %v834 = vadd.f32 %v821, %v830
      %v835 = vadd.f32 %v822, %v831
      %836 = vrot.lane.b32.xlu0 %v794, 127
      %v837 = vpop.permute.xlu0 %836
      %838 = vrot.lane.b32.xlu0 %v795, 127
      %v839 = vpop.permute.xlu0 %838
      %840 = vrot.lane.b32.xlu0 %v796, 127
      %v841 = vpop.permute.xlu0 %840
      %842 = vrot.lane.b32.xlu0 %v797, 127
      %v843 = vpop.permute.xlu0 %842
      %v844 = vmul.f32 %v837, %v562
      %v845 = vmul.f32 %v839, %v562
      %v846 = vmul.f32 %v841, %v562
      %v847 = vmul.f32 %v843, %v562
      %v848 = vld [vmem:[%s6 + $0x2] sm:$0x1]
      %v849 = vlaneseq
      %v850 = vshrl.u32 %v849, 7
      %v851 = vsub.s32 0, %v850
      %v852 = vrot.slane %v848, %v851
      %v853 = vmul.f32 %v852, %v844
      %v854 = vmul.f32 %v852, %v845
      %v855 = vmul.f32 %v852, %v846
      %v856 = vmul.f32 %v852, %v847
      %v857 = vadd.f32 %v832, %v853
      %v858 = vadd.f32 %v833, %v854
      %v859 = vadd.f32 %v834, %v855
      %v860 = vadd.f32 %v835, %v856
      %861 = vrot.lane.b32.xlu0 %v782, 1
      %v862 = vpop.permute.xlu0 %861
      %863 = vrot.lane.b32.xlu0 %v783, 1
      %v864 = vpop.permute.xlu0 %863
      %865 = vrot.lane.b32.xlu0 %v784, 1
      %v866 = vpop.permute.xlu0 %865
      %867 = vrot.lane.b32.xlu0 %v785, 1
      %v868 = vpop.permute.xlu0 %867
      %v869 = vmul.f32 %v862, %v559
      %v870 = vmul.f32 %v864, %v559
      %v871 = vmul.f32 %v866, %v559
      %v872 = vmul.f32 %v868, %v559
      %v873 = vld [vmem:[%s6 + $0x3] sm:$0x1]
      %v874 = vlaneseq
      %v875 = vshrl.u32 %v874, 7
      %v876 = vsub.s32 0, %v875
      %v877 = vrot.slane %v873, %v876
      %v878 = vmul.f32 %v877, %v869
      %v879 = vmul.f32 %v877, %v870
      %v880 = vmul.f32 %v877, %v871
      %v881 = vmul.f32 %v877, %v872
      %v882 = vadd.f32 %v857, %v878
      %v883 = vadd.f32 %v858, %v879
      %v884 = vadd.f32 %v859, %v880
      %v885 = vadd.f32 %v860, %v881
      %v886 = vld [vmem:[%s6 + $0x4] sm:$0x1]
      %v887 = vlaneseq
      %v888 = vshrl.u32 %v887, 7
      %v889 = vsub.s32 0, %v888
      %v890 = vrot.slane %v886, %v889
      %v891 = vmul.f32 %v890, %v782
      %v892 = vmul.f32 %v890, %v783
      %v893 = vmul.f32 %v890, %v784
      %v894 = vmul.f32 %v890, %v785
      %v895 = vadd.f32 %v882, %v891
      %v896 = vadd.f32 %v883, %v892
      %v897 = vadd.f32 %v884, %v893
      %v898 = vadd.f32 %v885, %v894
      %899 = vrot.lane.b32.xlu0 %v782, 127
      %v900 = vpop.permute.xlu0 %899
      %901 = vrot.lane.b32.xlu0 %v783, 127
      %v902 = vpop.permute.xlu0 %901
      %903 = vrot.lane.b32.xlu0 %v784, 127
      %v904 = vpop.permute.xlu0 %903
      %905 = vrot.lane.b32.xlu0 %v785, 127
      %v906 = vpop.permute.xlu0 %905
      %v907 = vmul.f32 %v900, %v562
      %v908 = vmul.f32 %v902, %v562
      %v909 = vmul.f32 %v904, %v562
      %v910 = vmul.f32 %v906, %v562
      %v911 = vld [vmem:[%s6 + $0x5] sm:$0x1]
      %v912 = vlaneseq
      %v913 = vshrl.u32 %v912, 7
      %v914 = vsub.s32 0, %v913
      %v915 = vrot.slane %v911, %v914
      %v916 = vmul.f32 %v915, %v907
      %v917 = vmul.f32 %v915, %v908
      %v918 = vmul.f32 %v915, %v909
      %v919 = vmul.f32 %v915, %v910
      %v920 = vadd.f32 %v895, %v916
      %v921 = vadd.f32 %v896, %v917
      %v922 = vadd.f32 %v897, %v918
      %v923 = vadd.f32 %v898, %v919
      %v924 = vrot.slane %v782, 1
      %v925 = vrot.slane %v783, 1
      %v926 = vrot.slane %v784, 1
      %v927 = vrot.slane %v785, 1
      %v928 = vsel %vm710, %v926, %v927
      %v929 = vsel %vm710, %v925, %v926
      %v930 = vsel %vm710, %v924, %v925
      %v931 = vsel %vm710, %v927, %v924
      %v932 = vmul.f32 %v930, %v553
      %v933 = vmul.f32 %v929, %v554
      %v934 = vmul.f32 %v928, %v555
      %v935 = vmul.f32 %v931, %v556
      %936 = vrot.lane.b32.xlu0 %v932, 1
      %v937 = vpop.permute.xlu0 %936
      %938 = vrot.lane.b32.xlu0 %v933, 1
      %v939 = vpop.permute.xlu0 %938
      %940 = vrot.lane.b32.xlu0 %v934, 1
      %v941 = vpop.permute.xlu0 %940
      %942 = vrot.lane.b32.xlu0 %v935, 1
      %v943 = vpop.permute.xlu0 %942
      %v944 = vmul.f32 %v937, %v559
      %v945 = vmul.f32 %v939, %v559
      %v946 = vmul.f32 %v941, %v559
      %v947 = vmul.f32 %v943, %v559
      %v948 = vld [vmem:[%s6 + $0x6] sm:$0x1]
      %v949 = vlaneseq
      %v950 = vshrl.u32 %v949, 7
      %v951 = vsub.s32 0, %v950
      %v952 = vrot.slane %v948, %v951
      %v953 = vmul.f32 %v952, %v944
      %v954 = vmul.f32 %v952, %v945
      %v955 = vmul.f32 %v952, %v946
      %v956 = vmul.f32 %v952, %v947
      %v957 = vadd.f32 %v920, %v953
      %v958 = vadd.f32 %v921, %v954
      %v959 = vadd.f32 %v922, %v955
      %v960 = vadd.f32 %v923, %v956
      %v961 = vld [vmem:[%s6 + $0x7] sm:$0x1]
      %v962 = vlaneseq
      %v963 = vshrl.u32 %v962, 7
      %v964 = vsub.s32 0, %v963
      %v965 = vrot.slane %v961, %v964
      %v966 = vmul.f32 %v965, %v932
      %v967 = vmul.f32 %v965, %v933
      %v968 = vmul.f32 %v965, %v934
      %v969 = vmul.f32 %v965, %v935
      %v970 = vadd.f32 %v957, %v966
      %v971 = vadd.f32 %v958, %v967
      %v972 = vadd.f32 %v959, %v968
      %v973 = vadd.f32 %v960, %v969
      %974 = vrot.lane.b32.xlu0 %v932, 127
      %v975 = vpop.permute.xlu0 %974
      %976 = vrot.lane.b32.xlu0 %v933, 127
      %v977 = vpop.permute.xlu0 %976
      %978 = vrot.lane.b32.xlu0 %v934, 127
      %v979 = vpop.permute.xlu0 %978
      %980 = vrot.lane.b32.xlu0 %v935, 127
      %v981 = vpop.permute.xlu0 %980
      %v982 = vmul.f32 %v975, %v562
      %v983 = vmul.f32 %v977, %v562
      %v984 = vmul.f32 %v979, %v562
      %v985 = vmul.f32 %v981, %v562
      %v986 = vld [vmem:[%s6 + $0x8] sm:$0x1]
      %v987 = vlaneseq
      %v988 = vshrl.u32 %v987, 7
      %v989 = vsub.s32 0, %v988
      %v990 = vrot.slane %v986, %v989
      %v991 = vmul.f32 %v990, %v982
      %v992 = vmul.f32 %v990, %v983
      %v993 = vmul.f32 %v990, %v984
      %v994 = vmul.f32 %v990, %v985
      %v995 = vadd.f32 %v970, %v991
      %v996 = vadd.f32 %v971, %v992
      %v997 = vadd.f32 %v972, %v993
      %v998 = vadd.f32 %v973, %v994
      %999 = vrot.lane.b32.xlu0 %v995, 64
      %v1000 = vpop.permute.xlu0 %999
      %1001 = vrot.lane.b32.xlu0 %v996, 64
      %v1002 = vpop.permute.xlu0 %1001
      %1003 = vrot.lane.b32.xlu0 %v997, 64
      %v1004 = vpop.permute.xlu0 %1003
      %1005 = vrot.lane.b32.xlu0 %v998, 64
      %v1006 = vpop.permute.xlu0 %1005
      %v1007 = vadd.f32 %v995, %v1000
      %v1008 = vadd.f32 %v996, %v1002
      %v1009 = vadd.f32 %v997, %v1004
      %v1010 = vadd.f32 %v998, %v1006
      %1011 = vrot.lane.b32.xlu0 %v1007, 96
      %v1012 = vpop.permute.xlu0 %1011
      %1013 = vrot.lane.b32.xlu0 %v1008, 96
      %v1014 = vpop.permute.xlu0 %1013
      %1015 = vrot.lane.b32.xlu0 %v1009, 96
      %v1016 = vpop.permute.xlu0 %1015
      %1017 = vrot.lane.b32.xlu0 %v1010, 96
      %v1018 = vpop.permute.xlu0 %1017
      %v1019 = vadd.f32 %v1007, %v1012
      %v1020 = vadd.f32 %v1008, %v1014
      %v1021 = vadd.f32 %v1009, %v1016
      %v1022 = vadd.f32 %v1010, %v1018
      %1023 = vrot.lane.b32.xlu0 %v1019, 112
      %v1024 = vpop.permute.xlu0 %1023
      %1025 = vrot.lane.b32.xlu0 %v1020, 112
      %v1026 = vpop.permute.xlu0 %1025
      %1027 = vrot.lane.b32.xlu0 %v1021, 112
      %v1028 = vpop.permute.xlu0 %1027
      %1029 = vrot.lane.b32.xlu0 %v1022, 112
      %v1030 = vpop.permute.xlu0 %1029
      %v1031 = vadd.f32 %v1019, %v1024
      %v1032 = vadd.f32 %v1020, %v1026
      %v1033 = vadd.f32 %v1021, %v1028
      %v1034 = vadd.f32 %v1022, %v1030
      %s1035 = sld [smem:[#allocation2]]
      %v1036 = vstv %s1035
      %v1037 = vadd.f32 %v1031, %v1036
      %v1038 = vadd.f32 %v1032, %v1036
      %v1039 = vadd.f32 %v1033, %v1036
      %v1040 = vadd.f32 %v1034, %v1036
      %vm1041 = vcmask 130048
      %1042 = vst.msk [vmem:[%s396] sm:$0xff] %vm1041, %v1037
      %1043 = vst.msk [vmem:[%s396 + $0x8] sm:$0xff] %vm1041, %v1038
      %1044 = vst.msk [vmem:[%s396 + $0x10] sm:$0xff] %vm1041, %v1039
      %1045 = vst.msk [vmem:[%s396 + $0x18] sm:$0xff] %vm1041, %v1040
      %s1046 = smul.u32 4, %s20
      %p1047 = scmp.lt.s32.totalorder %s1046, 7
      %s1048 = scalar_select %p1047, %s1046, 7
      %s1049 = smul.addr %s1048, 8
      %s1050 = scalar_lea.vmem %s8, %s1049
      // Predicated region
      $region53: #{lccd_forward.39} parent=51 // pred_check
        %p1051 = pneg %p231
      $region54: #{lccd_forward.39} parent=51 // pred_check_branch
        %1053 = sbr.rel (%p1051) target = $region56
      $region55: #{lccd_forward.39} parent=51 // pred_region
        %s1054 = smul.u32 4, %s20
      $region56: #{lccd_forward.39} parent=51 // pred_fallthru
        _
    $region52: #{lccd_forward.39} parent=5 // pred_fallthru
      _
    %p1055 = scmp.le.s32.totalorder 2, %s15
    // Predicated region
    $region57: #{lccd_forward.39} parent=5 // pred_check
      %p1056 = pneg %p1055
    $region58: #{lccd_forward.39} parent=5 // pred_check_branch
      %1058 = sbr.rel (%p1056) target = $region60
    $region59: #{lccd_forward.39} parent=5 // pred_region
      %s1059 = ssub.s32 %s15, 2
      // Predicated region
      $region61: #{lccd_forward.39} parent=59 // pred_check
        %p1060 = pneg %p237
      $region62: #{lccd_forward.39} parent=59 // pred_check_branch
        %1062 = sbr.rel (%p1060) target = $region64
      $region63: #{lccd_forward.39} parent=59 // pred_region
        %s1063 = smul.u32 4, %s21
        %p1064 = scmp.lt.s32.totalorder %s1063, 7
        %s1065 = scalar_select %p1064, %s1063, 7
        %s1066 = smul.addr %s1065, 8
        %s1067 = scalar_lea.vmem %s8, %s1066
      $region64: #{lccd_forward.39} parent=59 // pred_fallthru
        _
    $region60: #{lccd_forward.39} parent=5 // pred_fallthru
      _
  $region6: #{lccd_forward.39} parent=0 // loop_footer
    %s19 = sadd.s32 1, %s15
  $region7: #{lccd_forward.39} parent=0 // loop_footer_branch
    %14 = sbr.rel target = $region3
  $region8: #{lccd_forward.39} parent=0 // loop_exit
    _

</llo_original>
